<compile_context>
chip_gen: v7x
topology: tpu7x:2x2x1
jax: 0.10.0
libtpu: 0.0.40
codegen_flags: <defaults>
</compile_context>

<pallas_src>
import functools

import jax
import jax.numpy as jnp
from jax import lax
from jax.experimental import pallas as pl
from jax.experimental.pallas import tpu as pltpu


def _contrastive_kernel(m_ref, out_ref, max_acc, pos_acc, *, margin, batch):
    i = pl.program_id(0)
    j = pl.program_id(1)
    n_col = pl.num_programs(1)

    tm, tn = m_ref.shape
    acc_w = max_acc.shape[1]          # 128, or tn when there is a single column block

    blk = m_ref[...]                  # (tm, tn), native dtype (bf16 stays bf16)
    neg_inf = jnp.asarray(-jnp.inf, blk.dtype)

    row_start = i * tm
    col_start = j * tn
    local_row = lax.broadcasted_iota(jnp.int32, (tm, 1), 0)   # (tm, 1)

    @pl.when(j == 0)
    def _init():
        max_acc[...] = jnp.full(max_acc.shape, neg_inf, dtype=max_acc.dtype)
        pos_acc[...] = jnp.zeros_like(pos_acc)

    def fold(acc, x):
        # Lane-wise running max: unrolled, lane-aligned vreg maxima (VALU only,
        # no cross-lane XLU reduce per block).
        for g in range(x.shape[1] // acc_w):
            acc = jnp.maximum(acc, x[:, g * acc_w:(g + 1) * acc_w])
        return acc

    has_col_pad = (batch % tn) != 0                       # static Python bool
    overlaps = jnp.logical_and(col_start < row_start + tm,
                               col_start + tn > row_start)
    if has_col_pad:
        needs_mask = jnp.logical_or(overlaps, j == n_col - 1)
    else:
        needs_mask = overlaps

    @pl.when(needs_mask)
    def _masked_block():
        # Only blocks containing the diagonal (or padded columns) pay for the
        # iota compare + select.
        col_ids = col_start + lax.broadcasted_iota(jnp.int32, (1, tn), 1)
        row_ids = row_start + local_row
        is_diag = col_ids == row_ids                      # (tm, tn) bool
        keep = jnp.logical_not(is_diag)
        if has_col_pad:
            keep = jnp.logical_and(keep, col_ids < batch)
        masked = jnp.where(keep, blk, neg_inf)
        max_acc[...] = fold(max_acc[...], masked)
        # Each row has at most one diagonal entry -> exact even in bf16.
        pos_acc[...] = pos_acc[...] + jnp.sum(
            jnp.where(is_diag, blk, jnp.zeros_like(blk)),
            axis=-1, keepdims=True, dtype=jnp.float32)

    @pl.when(jnp.logical_not(needs_mask))
    def _plain_block():
        max_acc[...] = fold(max_acc[...], blk)

    @pl.when(j == n_col - 1)
    def _finalize():
        negatives = jnp.max(max_acc[...].astype(jnp.float32),
                            axis=-1, keepdims=True)        # (tm, 1) f32
        per_row = jnp.maximum(negatives - pos_acc[...] + margin, 0.0)
        if batch % tm != 0:
            # Padded rows of the last row tile contain garbage -> drop them.
            per_row = jnp.where(row_start + local_row < batch, per_row, 0.0)
        out_ref[...] = jnp.full(out_ref.shape, jnp.sum(per_row),
                                dtype=out_ref.dtype)


def contrastive_loss(matrix, margin=0.2, tm=256, tn=2048):
    """matrix: [B, B] similarity matrix (any float dtype). Returns f32 scalar loss.

    tm: row-tile size (128-multiple, >=2 tiles for B >= 256 so v7x uses both TCs).
    tn: column-tile size; B <= tn runs as a single column block, larger B is
        column-tiled so VMEM stays bounded for any B.
    """
    B, B2 = matrix.shape
    assert B == B2, "expected a square similarity matrix"
    assert B >= 2, "contrastive loss needs at least 2 items (matches argsort[:, :2])"
    if not jnp.issubdtype(matrix.dtype, jnp.floating):
        matrix = matrix.astype(jnp.float32)

    # Row tile: multiple of 128 (or the full dim for small B); ensure at least
    # two row tiles once B >= 256 so the "parallel" axis shards across v7x TCs.
    if B < 256:
        tm_eff = B
    else:
        tm_eff = max(128, (min(int(tm), 512) // 128) * 128)
        if B <= tm_eff:
            tm_eff = max(128, ((B // 2) // 128) * 128)

    # Column tile: full width (single block) for small/medium B, else 128-multiple.
    if B <= tn:
        tn_eff = B
    else:
        tn_eff = max(128, (int(tn) // 128) * 128)

    n_row = pl.cdiv(B, tm_eff)
    n_col = pl.cdiv(B, tn_eff)
    acc_w = 128 if tn_eff % 128 == 0 else tn_eff   # single col block when not 128-aligned

    itemsize = jnp.dtype(matrix.dtype).itemsize
    try:
        vmem_cap = int(pltpu.get_tpu_info().vmem_capacity_bytes)
    except Exception:
        vmem_cap = 64 << 20                        # conservative (v7x per-TC)
    vmem_need = (2 * tm_eff * tn_eff * itemsize    # double-buffered input block
                 + tm_eff * acc_w * itemsize       # max accumulator scratch
                 + tm_eff * 512                    # pos accumulator (lane-padded)
                 + (4 << 20))                      # intermediates + slack
    vmem_bytes = int(min(max(vmem_need, 16 << 20),
                         max(vmem_cap - (8 << 20), 16 << 20)))

    kernel = functools.partial(_contrastive_kernel, margin=float(margin), batch=B)

    partials = pl.pallas_call(
        kernel,
        out_shape=jax.ShapeDtypeStruct((n_row, 8, 128), jnp.float32),
        grid_spec=pltpu.PrefetchScalarGridSpec(
            num_scalar_prefetch=0,
            grid=(n_row, n_col),
            in_specs=[pl.BlockSpec((tm_eff, tn_eff), lambda i, j: (i, j))],
            out_specs=pl.BlockSpec((1, 8, 128), lambda i, j: (i, 0, 0)),
            scratch_shapes=[
                pltpu.VMEM((tm_eff, acc_w), matrix.dtype),   # lane-wise max acc
                pltpu.VMEM((tm_eff, 1), jnp.float32),        # positives (diag)
            ],
        ),
        compiler_params=pltpu.CompilerParams(
            dimension_semantics=("parallel", "arbitrary"),
            vmem_limit_bytes=vmem_bytes,
        ),
    )(matrix)

    # Tiny final reduction over per-row-tile partial sums in plain XLA.
    return jnp.sum(partials[:, 0, 0])


def _reference(matrix, margin=0.2):
    # Pure-JAX reference mirroring the PyTorch module exactly.
    m = matrix.astype(jnp.float32)
    B = m.shape[0]
    idx = jnp.arange(B)
    order = jnp.argsort(-m, axis=-1)[:, :2]
    neg_is_first = order[:, 0] != idx
    neg_idx = jnp.where(neg_is_first, order[:, 0], order[:, 1])
    positives = m[idx, idx]
    negatives = m[idx, neg_idx]
    return jnp.sum(jnp.maximum(negatives - positives + margin, 0.0))


if __name__ == "__main__":
    key = jax.random.PRNGKey(0)
    k1, k2 = jax.random.split(key)

    # 1) Small fast path: single (B, B) block, f32, B=8.
    m_small = jax.random.normal(k1, (8, 8), dtype=jnp.float32)
    loss_small = contrastive_loss(m_small, margin=0.2)
    jax.block_until_ready(loss_small)
    ref_small = _reference(m_small, margin=0.2)
    assert jnp.allclose(loss_small, ref_small, atol=1e-5, rtol=1e-5), (loss_small, ref_small)

    # 2) Fully tiled path: bf16, B=320 with tm=tn=128 -> 3x3 grid exercising the
    #    column-reduction accumulator, diagonal-block masking, and padding on
    #    both the last row tile and the last column block.
    m_big = jax.random.normal(k2, (320, 320), dtype=jnp.float32).astype(jnp.bfloat16)
    loss_big = contrastive_loss(m_big, margin=0.2, tm=128, tn=128)
    jax.block_until_ready(loss_big)
    ref_big = _reference(m_big, margin=0.2)
    assert jnp.allclose(loss_big, ref_big, atol=5e-2, rtol=1e-4), (loss_big, ref_big)

    # 3) Default tiles: f32, B=320 -> 2 row tiles (v7x megacore path), single
    #    column block, remainder-row masking.
    m_mid = jax.random.normal(k1, (320, 320), dtype=jnp.float32)
    loss_mid = contrastive_loss(m_mid, margin=0.2)
    jax.block_until_ready(loss_mid)
    ref_mid = _reference(m_mid, margin=0.2)
    assert jnp.allclose(loss_mid, ref_mid, atol=1e-4, rtol=1e-5), (loss_mid, ref_mid)

    print("KERNEL_OK")
</pallas_src>

<mosaic_0001>
module attributes {stable_mosaic.version = 11 : i64} {
  func.func @_contrastive_kernel(%arg0: i32, %arg1: i32, %arg2: memref<8x8xf32, #tpu.memory_space<vmem>>, %arg3: memref<1x8x128xf32, #tpu.memory_space<vmem>>, %arg4: memref<8x8xf32, #tpu.memory_space<vmem>>, %arg5: memref<8x1xf32, #tpu.memory_space<vmem>>) attributes {dimension_semantics = [#tpu.dimension_semantics<parallel>, #tpu.dimension_semantics<arbitrary>], iteration_bounds = array<i64: 1, 1>, scalar_prefetch = 0 : i64, scratch_operands = 2 : i64, tpu.core_type = #tpu.core_type<tc>, window_params = [{transform_indices = @transform_0, window_bounds = array<i64: 8, 8>}, {transform_indices = @transform_1, window_bounds = array<i64: 1, 8, 128>}]} {
    %c0 = arith.constant 0 : index
    %c0_0 = arith.constant 0 : index
    %0 = vector.load %arg2[%c0, %c0_0] : memref<8x8xf32, #tpu.memory_space<vmem>>, vector<8x8xf32>
    %c8_i32 = arith.constant 8 : i32
    %1 = arith.muli %arg0, %c8_i32 : i32
    %c8_i32_1 = arith.constant 8 : i32
    %2 = arith.muli %arg1, %c8_i32_1 : i32
    %3 = tpu.iota {dimensions = array<i32: 0>} : vector<8x1xi32>
    %c0_i32 = arith.constant 0 : i32
    %4 = arith.cmpi eq, %arg1, %c0_i32 : i32
    %5 = arith.extui %4 : i1 to i32
    %cst = arith.constant 0xFF800000 : f32
    %c0_i32_2 = arith.constant 0 : i32
    %6 = arith.cmpi ne, %5, %c0_i32_2 : i32
    scf.if %6 {
      %20 = vector.broadcast %cst : f32 to vector<8x8xf32>
      %c0_10 = arith.constant 0 : index
      %c0_11 = arith.constant 0 : index
      %21 = vector.load %arg4[%c0_10, %c0_11] : memref<8x8xf32, #tpu.memory_space<vmem>>, vector<8x8xf32>
      tpu.vector_store %arg4[%c0_10, %c0_11], %20 {strides = array<i32>} : memref<8x8xf32, #tpu.memory_space<vmem>>, vector<8x8xf32>,
      %cst_12 = arith.constant 0.000000e+00 : f32
      %22 = vector.broadcast %cst_12 : f32 to vector<8x1xf32>
      %c0_13 = arith.constant 0 : index
      %c0_14 = arith.constant 0 : index
      %23 = vector.load %arg5[%c0_13, %c0_14] : memref<8x1xf32, #tpu.memory_space<vmem>>, vector<8x1xf32>
      tpu.vector_store %arg5[%c0_13, %c0_14], %22 {strides = array<i32>} : memref<8x1xf32, #tpu.memory_space<vmem>>, vector<8x1xf32>,
    } else {
    }
    %c8_i32_3 = arith.constant 8 : i32
    %7 = arith.addi %1, %c8_i32_3 : i32
    %8 = arith.cmpi slt, %2, %7 : i32
    %c8_i32_4 = arith.constant 8 : i32
    %9 = arith.addi %2, %c8_i32_4 : i32
    %10 = arith.cmpi sgt, %9, %1 : i32
    %11 = arith.andi %8, %10 : i1
    %12 = arith.extui %11 : i1 to i32
    %cst_5 = arith.constant 0xFF800000 : f32
    %c0_i32_6 = arith.constant 0 : i32
    %13 = arith.cmpi ne, %12, %c0_i32_6 : i32
    scf.if %13 {
      %20 = tpu.iota {dimensions = array<i32: 1>} : vector<1x8xi32>
      %21 = vector.broadcast %2 : i32 to vector<1x8xi32>
      %22 = arith.addi %21, %20 : vector<1x8xi32>
      %23 = vector.broadcast %1 : i32 to vector<8x1xi32>
      %24 = arith.addi %23, %3 : vector<8x1xi32>
      %25 = vector.broadcast %22 : vector<1x8xi32> to vector<8x8xi32>
      %26 = vector.broadcast %24 : vector<8x1xi32> to vector<8x8xi32>
      %27 = arith.cmpi eq, %25, %26 : vector<8x8xi32>
      %cst_10 = arith.constant dense<true> : vector<8x8xi1>
      %28 = arith.xori %27, %cst_10 : vector<8x8xi1>
      %29 = vector.broadcast %cst_5 : f32 to vector<8x8xf32>
      %30 = arith.select %28, %0, %29 : vector<8x8xi1>, vector<8x8xf32>
      %c0_11 = arith.constant 0 : index
      %c0_12 = arith.constant 0 : index
      %31 = vector.load %arg4[%c0_11, %c0_12] : memref<8x8xf32, #tpu.memory_space<vmem>>, vector<8x8xf32>
      %32 = arith.maximumf %31, %30 : vector<8x8xf32>
      %c0_13 = arith.constant 0 : index
      %c0_14 = arith.constant 0 : index
      %33 = vector.load %arg4[%c0_13, %c0_14] : memref<8x8xf32, #tpu.memory_space<vmem>>, vector<8x8xf32>
      tpu.vector_store %arg4[%c0_13, %c0_14], %32 {strides = array<i32>} : memref<8x8xf32, #tpu.memory_space<vmem>>, vector<8x8xf32>,
      %c0_15 = arith.constant 0 : index
      %c0_16 = arith.constant 0 : index
      %34 = vector.load %arg5[%c0_15, %c0_16] : memref<8x1xf32, #tpu.memory_space<vmem>>, vector<8x1xf32>
      %cst_17 = arith.constant 0.000000e+00 : f32
      %35 = vector.broadcast %cst_17 : f32 to vector<8x8xf32>
      %36 = arith.select %27, %0, %35 : vector<8x8xi1>, vector<8x8xf32>
      %cst_18 = arith.constant dense<0.000000e+00> : vector<8xf32>
      %37 = vector.multi_reduction <add>, %36, %cst_18 [1] : vector<8x8xf32> to vector<8xf32>
      %38 = vector.shape_cast %37 : vector<8xf32> to vector<8x1xf32>
      %39 = arith.addf %34, %38 : vector<8x1xf32>
      %c0_19 = arith.constant 0 : index
      %c0_20 = arith.constant 0 : index
      %40 = vector.load %arg5[%c0_19, %c0_20] : memref<8x1xf32, #tpu.memory_space<vmem>>, vector<8x1xf32>
      tpu.vector_store %arg5[%c0_19, %c0_20], %39 {strides = array<i32>} : memref<8x1xf32, #tpu.memory_space<vmem>>, vector<8x1xf32>,
    } else {
    }
    %true = arith.constant true
    %14 = arith.xori %11, %true : i1
    %15 = arith.extui %14 : i1 to i32
    %c0_i32_7 = arith.constant 0 : i32
    %16 = arith.cmpi ne, %15, %c0_i32_7 : i32
    scf.if %16 {
      %c0_10 = arith.constant 0 : index
      %c0_11 = arith.constant 0 : index
      %20 = vector.load %arg4[%c0_10, %c0_11] : memref<8x8xf32, #tpu.memory_space<vmem>>, vector<8x8xf32>
      %21 = arith.maximumf %20, %0 : vector<8x8xf32>
      %c0_12 = arith.constant 0 : index
      %c0_13 = arith.constant 0 : index
      %22 = vector.load %arg4[%c0_12, %c0_13] : memref<8x8xf32, #tpu.memory_space<vmem>>, vector<8x8xf32>
      tpu.vector_store %arg4[%c0_12, %c0_13], %21 {strides = array<i32>} : memref<8x8xf32, #tpu.memory_space<vmem>>, vector<8x8xf32>,
    } else {
    }
    %c0_i32_8 = arith.constant 0 : i32
    %17 = arith.cmpi eq, %arg1, %c0_i32_8 : i32
    %18 = arith.extui %17 : i1 to i32
    %c0_i32_9 = arith.constant 0 : i32
    %19 = arith.cmpi ne, %18, %c0_i32_9 : i32
    scf.if %19 {
      %c0_10 = arith.constant 0 : index
      %c0_11 = arith.constant 0 : index
      %20 = vector.load %arg4[%c0_10, %c0_11] : memref<8x8xf32, #tpu.memory_space<vmem>>, vector<8x8xf32>
      %cst_12 = arith.constant dense<0xFF800000> : vector<8xf32>
      %21 = vector.multi_reduction <maximumf>, %20, %cst_12 [1] : vector<8x8xf32> to vector<8xf32>
      %22 = vector.shape_cast %21 : vector<8xf32> to vector<8x1xf32>
      %c0_13 = arith.constant 0 : index
      %c0_14 = arith.constant 0 : index
      %23 = vector.load %arg5[%c0_13, %c0_14] : memref<8x1xf32, #tpu.memory_space<vmem>>, vector<8x1xf32>
      %24 = arith.subf %22, %23 : vector<8x1xf32>
      %cst_15 = arith.constant 2.000000e-01 : f32
      %25 = vector.broadcast %cst_15 : f32 to vector<8x1xf32>
      %26 = arith.addf %24, %25 : vector<8x1xf32>
      %cst_16 = arith.constant 0.000000e+00 : f32
      %27 = vector.broadcast %cst_16 : f32 to vector<8x1xf32>
      %28 = arith.maximumf %26, %27 : vector<8x1xf32>
      %29 = vector.shape_cast %28 : vector<8x1xf32> to vector<1x8x1xf32>
      %cst_17 = arith.constant dense<0.000000e+00> : vector<1xf32>
      %30 = vector.multi_reduction <add>, %29, %cst_17 [1, 2] : vector<1x8x1xf32> to vector<1xf32>
      %31 = vector.shape_cast %30 : vector<1xf32> to vector<1x1x1xf32>
      %32 = vector.extract %31[0, 0, 0] : f32 from vector<1x1x1xf32>
      %33 = vector.broadcast %32 : f32 to vector<1x8x128xf32>
      %c0_18 = arith.constant 0 : index
      %c0_19 = arith.constant 0 : index
      %c0_20 = arith.constant 0 : index
      %34 = vector.load %arg3[%c0_18, %c0_19, %c0_20] : memref<1x8x128xf32, #tpu.memory_space<vmem>>, vector<1x8x128xf32>
      tpu.vector_store %arg3[%c0_18, %c0_19, %c0_20], %33 {strides = array<i32>} : memref<1x8x128xf32, #tpu.memory_space<vmem>>, vector<1x8x128xf32>,
    } else {
    }
    return
  }
  func.func @transform_0(%arg0: i32, %arg1: i32) -> (i32, i32) {
    %c0_i32 = arith.constant 0 : i32
    return %arg0, %arg1 : i32, i32
  }
  func.func @transform_1(%arg0: i32, %arg1: i32) -> (i32, i32, i32) {
    %c0_i32 = arith.constant 0 : i32
    %c0_i32_0 = arith.constant 0 : i32
    %c0_i32_1 = arith.constant 0 : i32
    return %arg0, %c0_i32, %c0_i32_0 : i32, i32, i32
  }
}

</mosaic_0001>

<llo_original>
// kernel: tpu_custom_call.1
$region0: #{tpu_custom_call.1}
  #allocation0 [shape = 'u32[]', space=smem, size = 0x4, offset = 0x4, fixed_abs, tag = 'smem constant byte address 0x4 - core index']
  #allocation1 [shape = 'u32[144,128]{1,0:T(1,128)}', space=vmem, size = 0x12000, scoped, tag = 'internal scratch']
  #allocation2 [shape = 'f32[8,8]{1,0:T(8,128)}', space=vmem, size = 0x1000, scoped, tag = 'scratch operand']
  #allocation3 [shape = 'f32[8,1]{1,0:T(8,128)}', space=vmem, size = 0x1000, scoped, tag = 'scratch operand']
  %s0 = inlined_call_operand.hbm [shape: f32[8,8], index: 0, kind: input, shape index: {}]
  %s1 = inlined_call_operand.hbm [shape: f32[1,8,128], index: 1, kind: output, shape index: {}]
  %s2 = sld [smem:[#allocation0]]
  $region34: #{tpu_custom_call.1} parent=0
    _
  %s4 = ssub.s32 1, %s2
  %s5 = scalar_select 0, %s4, %s2
  $region1: #{tpu_custom_call.1} parent=0
    #allocation4 [shape = 'u8[4096]{0}', space=vmem, size = 0x1000, scoped, tag = 'input window, operand 0, single buffered']
    #allocation5 [shape = 's32[1]{0}', space=sflag, size = 0x4, scoped, tag = 'scoped memory for tpu_custom_call.1']
    #allocation6 [shape = 's32[1]{0}', space=sflag, size = 0x4, scoped, tag = 'scoped memory for tpu_custom_call.1']
    #allocation7 [shape = 'u8[4096]{0}', space=vmem, size = 0x1000, scoped, tag = 'output window, operand 0, single buffered']
    %6 = vsyncpa [#allocation5], 0
    %7 = vsyncpa [#allocation6], 0
    // Predicated region
    $region2: #{tpu_custom_call.1} parent=1 // pred_check
      _
    $region3: #{tpu_custom_call.1} parent=1 // pred_check_branch
      %9 = sbr.rel (0) target = $region5
    $region4: #{tpu_custom_call.1} parent=1 // pred_region
      %s11 = ssub.s32 128, 128
      %12 = vsyncadd [#allocation5], %s11
      %s14 = sshll.u32 [#allocation4], 4
      %s15 = int_to_ptr.vmem [resolvable:$true] %s14
      %17 = dma.hbm_to_vmem [thread:$0]  %s0, 128, %s15, [#allocation5]
    $region5: #{tpu_custom_call.1} parent=1 // pred_fallthru
      _
    // Predicated region
    $region6: #{tpu_custom_call.1} parent=1 // pred_check
      _
    $region7: #{tpu_custom_call.1} parent=1 // pred_check_branch
      %19 = sbr.rel (0) target = $region9
    $region8: #{tpu_custom_call.1} parent=1 // pred_region
      %20 = dma.done [#allocation5], 128
    $region9: #{tpu_custom_call.1} parent=1 // pred_fallthru
      _
    %v21 = vld [vmem:[#allocation4] sm:$0xff]
    %s22 = smul.u32 0, 8
    %s23 = smul.u32 0, 8
    %v24 = vlaneseq
    %v25 = vshrl.u32 %v24, 7
    %p26 = scmp.eq.s32.totalorder 0, 0
    // Predicated region
    $region10: #{tpu_custom_call.1} parent=1 // pred_check
      %p27 = pneg %p26
    $region11: #{tpu_custom_call.1} parent=1 // pred_check_branch
      %29 = sbr.rel (%p27) target = $region13
    $region12: #{tpu_custom_call.1} parent=1 // pred_region
      %vm30 = vcmask 64512
      %31 = vst.msk [vmem:[#allocation2] sm:$0xff] %vm30, -inf
      %vm32 = vcmask 7168
      %33 = vst.msk [vmem:[#allocation3] sm:$0xff] %vm32, 0.0
    $region13: #{tpu_custom_call.1} parent=1 // pred_fallthru
      _
    %s34 = sadd.s32 %s22, 8
    %p35 = scmp.lt.s32.totalorder %s23, %s34
    %s36 = sadd.s32 %s23, 8
    %p37 = scmp.gt.s32.totalorder %s36, %s22
    %p38 = pnand %p35, %p37
    %p39 = pneg %p38
    // Predicated region
    $region14: #{tpu_custom_call.1} parent=1 // pred_check
      _
    $region15: #{tpu_custom_call.1} parent=1 // pred_check_branch
      %41 = sbr.rel (%p38) target = $region17
    $region16: #{tpu_custom_call.1} parent=1 // pred_region
      %v42 = vlaneseq
      %v43 = vand.u32 %v42, 127
      %v44 = vstv %s23
      %v45 = vadd.s32 %v44, %v43
      %v46 = vstv %s22
      %v47 = vadd.s32 %v46, %v25
      %vm48 = vcmp.eq.s32.totalorder %v45, %v47
      %vm49 = vmxor %vm48, 1
      %v50 = vsel %vm49, %v21, -inf
      %v51 = vld [vmem:[#allocation2] sm:$0xff]
      %v52 = vmax.f32 %v51, %v50
      %vm53 = vcmask 64512
      %54 = vst.msk [vmem:[#allocation2] sm:$0xff] %vm53, %v52
      %v55 = vld [vmem:[#allocation3] sm:$0xff]
      %v56 = vsel %vm48, %v21, 0.0
      %v57 = vsel %vm53, %v56, 0.0
      %58 = vadd.xlane.f32.xlu0 %v57
      %v59 = vpop.xlane.xlu0 %58
      %v60 = vadd.f32 %v55, %v59
      %vm61 = vcmask 7168
      %62 = vst.msk [vmem:[#allocation3] sm:$0xff] %vm61, %v60
    $region17: #{tpu_custom_call.1} parent=1 // pred_fallthru
      _
    %p63 = pneg %p39
    // Predicated region
    $region18: #{tpu_custom_call.1} parent=1 // pred_check
      _
    $region19: #{tpu_custom_call.1} parent=1 // pred_check_branch
      %65 = sbr.rel (%p39) target = $region21
    $region20: #{tpu_custom_call.1} parent=1 // pred_region
      %v66 = vld [vmem:[#allocation2] sm:$0xff]
      %v67 = vmax.f32 %v66, %v21
      %vm68 = vcmask 64512
      %69 = vst.msk [vmem:[#allocation2] sm:$0xff] %vm68, %v67
    $region21: #{tpu_custom_call.1} parent=1 // pred_fallthru
      _
    // Predicated region
    $region22: #{tpu_custom_call.1} parent=1 // pred_check
      %p70 = pneg %p26
    $region23: #{tpu_custom_call.1} parent=1 // pred_check_branch
      %72 = sbr.rel (%p70) target = $region25
    $region24: #{tpu_custom_call.1} parent=1 // pred_region
      %v73 = vld [vmem:[#allocation2] sm:$0xff]
      %vm74 = vcmask 64512
      %v75 = vsel %vm74, %v73, -inf
      %76 = vmax.xlane.f32.xlu0 %v75
      %v77 = vpop.xlane.xlu0 %76
      %v78 = vld [vmem:[#allocation3] sm:$0xff]
      %v79 = vsub.f32 %v77, %v78
      %v80 = vadd.f32 %v79, 0.2
      %v81 = vmax.f32 %v80, 0.0
      %vm82 = vcmask 7168
      %v83 = vsel %vm82, %v81, 0.0
      %84 = vadd.xlane.f32.xlu0 %v83
      %v85 = vpop.xlane.xlu0 %84
      %v86 = vrot.slane %v85, 4
      %v87 = vadd.f32 %v85, %v86
      %v88 = vrot.slane %v87, 2
      %v89 = vadd.f32 %v87, %v88
      %v90 = vrot.slane %v89, 1
      %v91 = vadd.f32 %v89, %v90
      %s92 = vtos %v91
      %v93 = vstv %s92
      %94 = vst [vmem:[#allocation7] sm:$0xff] %v93
    $region25: #{tpu_custom_call.1} parent=1 // pred_fallthru
      _
    // Predicated region
    $region26: #{tpu_custom_call.1} parent=1 // pred_check
      _
    $region27: #{tpu_custom_call.1} parent=1 // pred_check_branch
      %96 = sbr.rel (0) target = $region29
    $region28: #{tpu_custom_call.1} parent=1 // pred_region
      %s98 = ssub.s32 128, 128
      %99 = vsyncadd [#allocation6], %s98
      %s101 = sshll.u32 [#allocation7], 4
      %s102 = int_to_ptr.vmem [resolvable:$true] %s101
      %104 = dma.vmem_to_hbm [thread:$0]  %s102, 128, %s1, [#allocation6]
    $region29: #{tpu_custom_call.1} parent=1 // pred_fallthru
      _
    // Predicated region
    $region30: #{tpu_custom_call.1} parent=1 // pred_check
      _
    $region31: #{tpu_custom_call.1} parent=1 // pred_check_branch
      %106 = sbr.rel (0) target = $region33
    $region32: #{tpu_custom_call.1} parent=1 // pred_region
      %107 = dma.done [#allocation6], 128
    $region33: #{tpu_custom_call.1} parent=1 // pred_fallthru
      _
    %108 = vsyncpa [#allocation5], 1
    %109 = vsyncpa [#allocation6], 1

</llo_original>
